<compile_context>
chip_gen: v7x
topology: tpu7x:2x2x1
jax: 0.10.0
libtpu: 0.0.40
codegen_flags: <defaults>
</compile_context>

<pallas_src>
import functools

import jax
import jax.numpy as jnp
from jax.experimental import pallas as pl
from jax.experimental.pallas import tpu as pltpu


# ------------------------------ kernels: 3-D path (F % 128 == 0) ------------------------------

def _tap_softmax_kernel(x_ref, o_ref):
    # nn.Softmax(dim=1) over the singleton channel of [B, 1, T] -> attention == 1.0
    # (faithful PyTorch quirk), so the output is a plain sum over T (f32 accumulation).
    o_ref[...] = jnp.sum(x_ref[...], axis=1, dtype=jnp.float32).astype(o_ref.dtype)


def _tap_gated_kernel(x_ref, w_ref, b_ref, o_ref, *, pooling):
    x = x_ref[...]                                       # (bb, T, F), input dtype
    w = w_ref[...].astype(x_ref.dtype)                   # (1, F) conv weight, lane-major
    bias = b_ref[0, 0]                                   # scalar conv bias (SMEM)

    # Conv1d(F->1, k=1): logits[b, t] = x[b, t, :] . w + bias
    # Multiply in the input dtype; accumulate the lane reduction in f32 (VPU + XLU, no MXU).
    logits = jnp.sum(x * w[None, :, :], axis=-1, dtype=jnp.float32) + bias   # (bb, T)
    attn = jnp.tanh(logits) if pooling == "tanh" else jax.nn.sigmoid(logits)

    # Weighted sum over time on the VPU: broadcast-mul + sublane reduce, f32 accumulation.
    out = jnp.sum(attn.astype(x_ref.dtype)[:, :, None] * x, axis=1,
                  dtype=jnp.float32)                                         # (bb, F)
    o_ref[...] = out.astype(o_ref.dtype)


# --------------------------- kernels: lane-dense flat path (F % 128 != 0) ---------------------------
# Input is the flattened (B, T*F) row-major view; x[b, t*F + f] == features[b, t, f].

def _tap_softmax_kernel_flat(x_ref, o_ref, *, seq_len, feat):
    acc = x_ref[:, 0:feat].astype(jnp.float32)                   # (bb, F) f32 accumulator
    for t in range(1, seq_len):                                  # static, T is small
        acc = acc + x_ref[:, t * feat:(t + 1) * feat].astype(jnp.float32)
    o_ref[...] = acc.astype(o_ref.dtype)


def _tap_gated_kernel_flat(x_ref, w_ref, b_ref, o_ref, *, pooling, seq_len, feat):
    w = w_ref[...].astype(x_ref.dtype)                           # (1, F)
    bias = b_ref[0, 0]                                           # scalar conv bias (SMEM)
    acc = jnp.zeros(o_ref.shape, jnp.float32)                    # (bb, F) f32 accumulator
    for t in range(seq_len):                                     # static fma loop, no MXU
        xt = x_ref[:, t * feat:(t + 1) * feat]                   # (bb, F), input dtype
        logit = jnp.sum(xt * w, axis=-1, keepdims=True,
                        dtype=jnp.float32) + bias                # (bb, 1)
        a = jnp.tanh(logit) if pooling == "tanh" else jax.nn.sigmoid(logit)
        acc = acc + a.astype(x_ref.dtype) * xt                   # mul in input dtype, f32 accum
    o_ref[...] = acc.astype(o_ref.dtype)


# ------------------------------------------ wrapper ------------------------------------------

def _round_up(x, m):
    return ((x + m - 1) // m) * m


def _choose_block_batch(B, T, F, itemsize, lane_dense_flat, *,
                        target_bytes=8 << 20, vmem_budget=24 << 20):
    """Batch rows per grid step:
      * multiple of 8 (output-block sublane constraint) unless it covers the whole batch,
      * ~target_bytes of streamed input per step (amortizes ~0.35 us/step overhead),
      * clamped so double-buffered input + output + f32 temps stay well inside the
        32 MiB scoped VMEM limit (binding on v7x's 64 MiB physical VMEM),
      * grid kept even when possible so both v7x TensorCores get equal work.
    """
    # Per-row VMEM footprint inside the kernel, including (8,128) tile padding.
    if lane_dense_flat:
        row_in = _round_up(T * F, 128) * itemsize
    else:
        row_in = _round_up(T, 8) * _round_up(F, 128) * itemsize
    row_out = _round_up(F, 128) * 4
    row_tmp = _round_up(F, 128) * 4 + _round_up(T, 8) * 4        # f32 acc + attn (upper bound)
    per_row_vmem = 2 * row_in + 2 * row_out + row_tmp            # double-buffered in/out + temps
    bb_cap = max(8, (vmem_budget // per_row_vmem // 8) * 8)
    # TODO(synk): if even 8 rows overflow the budget (huge T*F), add a T reduction grid
    # axis with an f32 accumulator instead of shrinking bb below 8.

    bb = max(1, target_bytes // (T * F * itemsize))              # HBM-streaming target
    bb = max(8, (bb // 8) * 8)
    bb = min(bb, bb_cap)

    if bb >= B:
        if B >= 16:
            half = _round_up(-(-B // 2), 8)                      # >= 2 steps -> both v7x TCs busy
            if half < B:
                return half
        return B                                                 # whole (small) batch in one step

    g = -(-B // bb)                                              # cdiv
    if g % 2 == 1:                                               # prefer an even grid (v7x)
        cand = _round_up(-(-B // (g + 1)), 8)
        if 8 <= cand <= bb and (-(-B // cand)) % 2 == 0:
            bb = cand
    return bb


def temporal_attention_pooling(features, weight, bias, pooling="softmax"):
    """features: [B, T, F]; weight: Conv1d(F->1, k=1) weight (any of (1,F), (1,F,1), (F,));
    bias: conv bias (any of (1,), (1,1)). Returns [B, 1, F]."""
    if pooling not in ("softmax", "tanh", "sigmoid"):
        raise ValueError(f"unknown pooling: {pooling}")

    B, T, F = features.shape
    weight = jnp.asarray(weight).reshape(1, F)            # accept raw PyTorch (1, F, 1) layout
    bias = jnp.asarray(bias).reshape(1, 1).astype(jnp.float32)

    lane_dense_flat = (F % 128 != 0)                      # small / unaligned F -> flatten T*F
    bb = _choose_block_batch(B, T, F, features.dtype.itemsize, lane_dense_flat)
    grid = (pl.cdiv(B, bb),)

    out_shape = jax.ShapeDtypeStruct((B, F), features.dtype)
    out_spec = pl.BlockSpec((bb, F), lambda i: (i, 0))    # 2-D output slab
    compiler_params = pltpu.CompilerParams(
        dimension_semantics=("parallel",),
        vmem_limit_bytes=32 * 1024 * 1024,                # safe on v5e/v6e/v7x; bb is clamped to fit
    )

    if lane_dense_flat:
        x_in = features.reshape(B, T * F)                 # free row-major view; lane-dense DMA
        x_spec = pl.BlockSpec((bb, T * F), lambda i: (i, 0))
        softmax_kernel = functools.partial(_tap_softmax_kernel_flat, seq_len=T, feat=F)
        gated_kernel = functools.partial(_tap_gated_kernel_flat,
                                         pooling=pooling, seq_len=T, feat=F)
    else:
        x_in = features
        x_spec = pl.BlockSpec((bb, T, F), lambda i: (i, 0, 0))
        softmax_kernel = _tap_softmax_kernel
        gated_kernel = functools.partial(_tap_gated_kernel, pooling=pooling)

    if pooling == "softmax":
        # attn == 1 exactly -> pure time-sum; weight/bias are not even shipped to the kernel.
        out2d = pl.pallas_call(
            softmax_kernel,
            out_shape=out_shape,
            grid=grid,
            in_specs=[x_spec],
            out_specs=out_spec,
            compiler_params=compiler_params,
        )(x_in)
    else:
        out2d = pl.pallas_call(
            gated_kernel,
            out_shape=out_shape,
            grid=grid,
            in_specs=[
                x_spec,
                pl.BlockSpec((1, F), lambda i: (0, 0)),               # conv weight (1, F)
                pl.BlockSpec(memory_space=pltpu.MemorySpace.SMEM),    # scalar bias
            ],
            out_specs=out_spec,
            compiler_params=compiler_params,
        )(x_in, weight, bias)

    return out2d.reshape(B, 1, F)


def reference(features, weight, bias, pooling="softmax"):
    # Pure-JAX reference mirroring the PyTorch module exactly.
    logits = jnp.einsum("btf,sf->bts", features, weight) + bias[0, 0]   # [B, T, 1]
    if pooling == "softmax":
        attn = jnp.ones_like(logits)          # softmax over the singleton channel dim
    elif pooling == "tanh":
        attn = jnp.tanh(logits)
    else:
        attn = jax.nn.sigmoid(logits)
    return jnp.sum(attn * features, axis=1, keepdims=True)              # [B, 1, F]


if __name__ == "__main__":
    key = jax.random.PRNGKey(0)
    # Case 0 exercises the lane-dense flattened path (F=32 < 128); case 1 the 3-D path (F=128).
    cases = [(16, 8, 32), (8, 4, 128)]
    for ci, (B, T, F) in enumerate(cases):
        kx, kw, kb = jax.random.split(jax.random.fold_in(key, ci), 3)
        features = jax.random.normal(kx, (B, T, F), dtype=jnp.float32)
        # Conv1d(F, 1, kernel_size=1) params, small uniform init (outer_init-like, synthetic).
        weight = jax.random.uniform(kw, (1, F), dtype=jnp.float32, minval=-3e-3, maxval=3e-3)
        bias = jax.random.uniform(kb, (1, 1), dtype=jnp.float32, minval=-3e-3, maxval=3e-3)

        for pooling in ("softmax", "tanh", "sigmoid"):
            out = temporal_attention_pooling(features, weight, bias, pooling=pooling)
            out = jax.block_until_ready(out)
            ref = reference(features, weight, bias, pooling=pooling)
            assert out.shape == (B, 1, F), (pooling, out.shape)
            assert jnp.allclose(out, ref, atol=1e-5, rtol=1e-5), f"mismatch ({pooling}, F={F})"

    print("KERNEL_OK")
</pallas_src>

<mosaic_0001>
module attributes {stable_mosaic.version = 11 : i64} {
  func.func @_tap_softmax_kernel_flat(%arg0: i32, %arg1: memref<8x256xf32, #tpu.memory_space<vmem>>, %arg2: memref<8x32xf32, #tpu.memory_space<vmem>>) attributes {dimension_semantics = [#tpu.dimension_semantics<parallel>], iteration_bounds = array<i64: 2>, scalar_prefetch = 0 : i64, scratch_operands = 0 : i64, tpu.core_type = #tpu.core_type<tc>, window_params = [{transform_indices = @transform_0, window_bounds = array<i64: 8, 256>}, {transform_indices = @transform_1, window_bounds = array<i64: 8, 32>}]} {
    %c0 = arith.constant 0 : index
    %c0_0 = arith.constant 0 : index
    %0 = vector.load %arg1[%c0, %c0_0] : memref<8x256xf32, #tpu.memory_space<vmem>>, vector<8x32xf32>
    %c0_1 = arith.constant 0 : index
    %c32 = arith.constant 32 : index
    %1 = vector.load %arg1[%c0_1, %c32] : memref<8x256xf32, #tpu.memory_space<vmem>>, vector<8x32xf32>
    %2 = arith.addf %0, %1 : vector<8x32xf32>
    %c0_2 = arith.constant 0 : index
    %c64 = arith.constant 64 : index
    %3 = vector.load %arg1[%c0_2, %c64] : memref<8x256xf32, #tpu.memory_space<vmem>>, vector<8x32xf32>
    %4 = arith.addf %2, %3 : vector<8x32xf32>
    %c0_3 = arith.constant 0 : index
    %c96 = arith.constant 96 : index
    %5 = vector.load %arg1[%c0_3, %c96] : memref<8x256xf32, #tpu.memory_space<vmem>>, vector<8x32xf32>
    %6 = arith.addf %4, %5 : vector<8x32xf32>
    %c0_4 = arith.constant 0 : index
    %c128 = arith.constant 128 : index
    %7 = vector.load %arg1[%c0_4, %c128] : memref<8x256xf32, #tpu.memory_space<vmem>>, vector<8x32xf32>
    %8 = arith.addf %6, %7 : vector<8x32xf32>
    %c0_5 = arith.constant 0 : index
    %c160 = arith.constant 160 : index
    %9 = vector.load %arg1[%c0_5, %c160] : memref<8x256xf32, #tpu.memory_space<vmem>>, vector<8x32xf32>
    %10 = arith.addf %8, %9 : vector<8x32xf32>
    %c0_6 = arith.constant 0 : index
    %c192 = arith.constant 192 : index
    %11 = vector.load %arg1[%c0_6, %c192] : memref<8x256xf32, #tpu.memory_space<vmem>>, vector<8x32xf32>
    %12 = arith.addf %10, %11 : vector<8x32xf32>
    %c0_7 = arith.constant 0 : index
    %c224 = arith.constant 224 : index
    %13 = vector.load %arg1[%c0_7, %c224] : memref<8x256xf32, #tpu.memory_space<vmem>>, vector<8x32xf32>
    %14 = arith.addf %12, %13 : vector<8x32xf32>
    %c0_8 = arith.constant 0 : index
    %c0_9 = arith.constant 0 : index
    %15 = vector.load %arg2[%c0_8, %c0_9] : memref<8x32xf32, #tpu.memory_space<vmem>>, vector<8x32xf32>
    tpu.vector_store %arg2[%c0_8, %c0_9], %14 {strides = array<i32>} : memref<8x32xf32, #tpu.memory_space<vmem>>, vector<8x32xf32>,
    return
  }
  func.func @transform_0(%arg0: i32) -> (i32, i32) {
    %c0_i32 = arith.constant 0 : i32
    %c0_i32_0 = arith.constant 0 : i32
    return %arg0, %c0_i32 : i32, i32
  }
  func.func @transform_1(%arg0: i32) -> (i32, i32) {
    %c0_i32 = arith.constant 0 : i32
    %c0_i32_0 = arith.constant 0 : i32
    return %arg0, %c0_i32 : i32, i32
  }
}

</mosaic_0001>

<llo_original>
// kernel: tpu_custom_call.1
$region0: #{tpu_custom_call.1}
  #allocation0 [shape = 'u32[]', space=smem, size = 0x4, offset = 0x4, fixed_abs, tag = 'smem constant byte address 0x4 - core index']
  #allocation1 [shape = 'u32[144,128]{1,0:T(1,128)}', space=vmem, size = 0x12000, scoped, tag = 'internal scratch']
  %s0 = inlined_call_operand.hbm [shape: f32[16,256], index: 0, kind: input, shape index: {}]
  %s1 = inlined_call_operand.hbm [shape: f32[16,32], index: 1, kind: output, shape index: {}]
  %s2 = sld [smem:[#allocation0]]
  $region41: #{tpu_custom_call.1} parent=0
    _
  %s4 = ssub.s32 1, %s2
  %s5 = scalar_select 0, %s4, %s2
  $region1: #{tpu_custom_call.1} parent=0
    #allocation2 [shape = 'u8[16384]{0}', space=vmem, size = 0x4000, scoped, tag = 'input window, operand 0']
    #allocation3 [shape = 's32[2]{0}', space=sflag, size = 0x8, scoped, tag = 'scoped memory for tpu_custom_call.1']
    #allocation4 [shape = 's32[2]{0}', space=sflag, size = 0x8, scoped, tag = 'scoped memory for tpu_custom_call.1']
    #allocation5 [shape = 'u8[8192]{0}', space=vmem, size = 0x2000, scoped, tag = 'output window, operand 0']
    %6 = vsyncpa [#allocation3], 0
    %s7 = scalar_lea.sflag [#allocation3], 1
    %8 = vsyncpa %s7, 0
    %9 = vsyncpa [#allocation4], 0
    %s10 = scalar_lea.sflag [#allocation4], 1
    %11 = vsyncpa %s10, 0
    loop: start=0, step=1, limit=4
    $region2: #{tpu_custom_call.1} parent=1 // loop_pre_header
      _
    $region3: #{tpu_custom_call.1} parent=1 // loop_header
      %s13 = sphi 0, %s17
      %p14 = scmp.ge.s32.totalorder %s13, 4
      %s23 = sphi 0, %s25
      %s26 = sphi 0, %s23
      %s27 = sphi 0, %s26
      %s43 = sphi 0, %s27
      %s49 = sphi 0, %s51
      %s52 = sphi 0, %s49
      %s53 = sphi 0, %s52
      %s69 = sphi 0, %s53
    $region4: #{tpu_custom_call.1} parent=1 // loop_header_branch
      %16 = sbr.rel (%p14) target = $region8
    $region5: #{tpu_custom_call.1} parent=1 // loop_body
      %s18 = ssub.s32 %s13, 1
      %s19 = ssub.s32 %s13, 2
      %s20 = sadd.s32 %s13, 1
      %s21 = ssub.s32 %s13, %s20
      %p22 = scmp.eq.s32.totalorder %s21, 0
      %s24 = sadd.s32 %s23, 1
      %s25 = scalar_select %p22, %s23, %s24
      %p28 = pneg %p22
      %p29 = scmp.eq.s32.totalorder %s13, 1
      %p30 = por %p28, %p29
      %p31 = scmp.ne.s32.totalorder %s23, %s26
      %p32 = scmp.eq.s32.totalorder %s13, 0
      %p33 = por %p31, %p32
      %p34 = scmp.ne.s32.totalorder %s23, %s26
      %p35 = scmp.eq.s32.totalorder %s18, 1
      %p36 = por %p34, %p35
      %p37 = scmp.ne.s32.totalorder %s26, %s27
      %p38 = scmp.eq.s32.totalorder %s18, 0
      %p39 = por %p37, %p38
      %p40 = scmp.ne.s32.totalorder %s26, %s27
      %p41 = scmp.eq.s32.totalorder %s19, 1
      %p42 = por %p40, %p41
      %p44 = scmp.ne.s32.totalorder %s27, %s43
      %p45 = scmp.eq.s32.totalorder %s19, 0
      %p46 = por %p44, %p45
      %s47 = ssub.s32 %s13, %s20
      %p48 = scmp.eq.s32.totalorder %s47, 0
      %s50 = sadd.s32 %s49, 1
      %s51 = scalar_select %p48, %s49, %s50
      %p54 = pneg %p48
      %p55 = scmp.eq.s32.totalorder %s13, 1
      %p56 = por %p54, %p55
      %p57 = scmp.ne.s32.totalorder %s49, %s52
      %p58 = scmp.eq.s32.totalorder %s13, 0
      %p59 = por %p57, %p58
      %p60 = scmp.ne.s32.totalorder %s49, %s52
      %p61 = scmp.eq.s32.totalorder %s18, 1
      %p62 = por %p60, %p61
      %p63 = scmp.ne.s32.totalorder %s52, %s53
      %p64 = scmp.eq.s32.totalorder %s18, 0
      %p65 = por %p63, %p64
      %p66 = scmp.ne.s32.totalorder %s52, %s53
      %p67 = scmp.eq.s32.totalorder %s19, 1
      %p68 = por %p66, %p67
      %p70 = scmp.ne.s32.totalorder %s53, %s69
      %p71 = scmp.eq.s32.totalorder %s19, 0
      %p72 = por %p70, %p71
      %p73 = scmp.le.s32.totalorder 1, %s13
      %p74 = scmp.lt.s32.totalorder %s13, 3
      %p75 = pnand %p73, %p74
      %p76 = pneg %p75
      // Predicated region
      $region9: #{tpu_custom_call.1} parent=5 // pred_check
        _
      $region10: #{tpu_custom_call.1} parent=5 // pred_check_branch
        %78 = sbr.rel (%p75) target = $region12
      $region11: #{tpu_custom_call.1} parent=5 // pred_region
        %s79 = ssub.s32 %s13, 1
      $region12: #{tpu_custom_call.1} parent=5 // pred_fallthru
        _
      %p80 = scmp.lt.s32.totalorder %s13, 2
      // Predicated region
      $region13: #{tpu_custom_call.1} parent=5 // pred_check
        %p81 = pneg %p80
      $region14: #{tpu_custom_call.1} parent=5 // pred_check_branch
        %83 = sbr.rel (%p81) target = $region16
      $region15: #{tpu_custom_call.1} parent=5 // pred_region
        // Predicated region
        $region17: #{tpu_custom_call.1} parent=15 // pred_check
          %p84 = pneg %p33
        $region18: #{tpu_custom_call.1} parent=15 // pred_check_branch
          %86 = sbr.rel (%p84) target = $region20
        $region19: #{tpu_custom_call.1} parent=15 // pred_region
          %s87 = sand.u32 %s23, 1
          %s88 = scalar_lea.sflag [#allocation3], %s87
          %s89 = sand.u32 %s23, 1
          %s90 = smul.addr %s89, 16
          %s91 = scalar_lea.vmem [#allocation2], %s90
          %s93 = ssub.s32 256, 256
          %94 = vsyncadd %s88, %s93
          %s95 = smul.addr %s13, 2
          %s96 = smul.addr %s95, 128
          %s97 = scalar_lea.hbm %s0, %s96
          %s99 = sshll.u32 %s91, 4
          %s100 = int_to_ptr.vmem [resolvable:$true] %s99
          %102 = dma.hbm_to_vmem [thread:$0]  %s97, 256, %s100, %s88
        $region20: #{tpu_custom_call.1} parent=15 // pred_fallthru
          _
      $region16: #{tpu_custom_call.1} parent=5 // pred_fallthru
        _
      %p103 = scmp.le.s32.totalorder 1, %s13
      %p104 = scmp.lt.s32.totalorder %s13, 3
      %p105 = pnand %p103, %p104
      %p106 = pneg %p105
      // Predicated region
      $region21: #{tpu_custom_call.1} parent=5 // pred_check
        _
      $region22: #{tpu_custom_call.1} parent=5 // pred_check_branch
        %108 = sbr.rel (%p105) target = $region24
      $region23: #{tpu_custom_call.1} parent=5 // pred_region
        %s109 = ssub.s32 %s13, 1
        %s110 = sand.u32 %s26, 1
        %s111 = scalar_lea.sflag [#allocation3], %s110
        %s112 = sand.u32 %s26, 1
        %s113 = smul.addr %s112, 16
        %s114 = scalar_lea.vmem [#allocation2], %s113
        // Predicated region
        $region25: #{tpu_custom_call.1} parent=23 // pred_check
          %p115 = pneg %p39
        $region26: #{tpu_custom_call.1} parent=23 // pred_check_branch
          %117 = sbr.rel (%p115) target = $region28
        $region27: #{tpu_custom_call.1} parent=23 // pred_region
          %118 = dma.done %s111, 256
        $region28: #{tpu_custom_call.1} parent=23 // pred_fallthru
          _
        %s119 = sand.u32 %s26, 1
        %s120 = scalar_lea.sflag [#allocation3], %s119
        %s121 = sand.u32 %s26, 1
        %s122 = smul.addr %s121, 16
        %s123 = scalar_lea.vmem [#allocation2], %s122
        %p124 = pneg %p39
        %p125 = pneg %p36
        %p126 = pneg %p65
        %p127 = pneg %p62
        %s128 = sand.u32 %s52, 1
        %s129 = scalar_lea.sflag [#allocation4], %s128
        %s130 = sand.u32 %s52, 1
        %s131 = smul.addr %s130, 8
        %s132 = scalar_lea.vmem [#allocation5], %s131
        %v133 = vld [vmem:[%s114] sm:$0xff]
        %135 = vrot.lane.b32.xlu0 %v133, 96
        %v136 = vpop.permute.xlu0 %135
        %v138 = vadd.f32 %v133, %v136
        %139 = vrot.lane.b32.xlu0 %v133, 64
        %v140 = vpop.permute.xlu0 %139
        %v142 = vadd.f32 %v138, %v140
        %143 = vrot.lane.b32.xlu0 %v133, 32
        %v144 = vpop.permute.xlu0 %143
        %v146 = vadd.f32 %v142, %v144
        %v147 = vld [vmem:[%s114 + $0x8] sm:$0xff]
        %v148 = vadd.f32 %v146, %v147
        %150 = vrot.lane.b32.xlu0 %v147, 96
        %v151 = vpop.permute.xlu0 %150
        %v153 = vadd.f32 %v148, %v151
        %154 = vrot.lane.b32.xlu0 %v147, 64
        %v155 = vpop.permute.xlu0 %154
        %v157 = vadd.f32 %v153, %v155
        %158 = vrot.lane.b32.xlu0 %v147, 32
        %v159 = vpop.permute.xlu0 %158
        %v161 = vadd.f32 %v157, %v159
        %vm162 = vcmask 261120
        %163 = vst.msk [vmem:[%s132] sm:$0xff] %vm162, %v161
        %s164 = sand.u32 %s52, 1
        %s165 = scalar_lea.sflag [#allocation4], %s164
        %s166 = sand.u32 %s52, 1
        %s167 = smul.addr %s166, 8
        %s168 = scalar_lea.vmem [#allocation5], %s167
        // Predicated region
        $region29: #{tpu_custom_call.1} parent=23 // pred_check
          %p169 = pneg %p62
        $region30: #{tpu_custom_call.1} parent=23 // pred_check_branch
          %171 = sbr.rel (%p169) target = $region32
        $region31: #{tpu_custom_call.1} parent=23 // pred_region
          %s173 = ssub.s32 128, 128
          %174 = vsyncadd %s165, %s173
          %s175 = smul.addr %s18, 128
          %s176 = scalar_lea.hbm %s1, %s175
          %s178 = sshll.u32 %s168, 4
          %s179 = int_to_ptr.vmem [resolvable:$true] %s178
          %181 = dma.vmem_to_hbm [thread:$0]  %s179, 128, %s176, %s165
        $region32: #{tpu_custom_call.1} parent=23 // pred_fallthru
          _
      $region24: #{tpu_custom_call.1} parent=5 // pred_fallthru
        _
      %p182 = scmp.le.s32.totalorder 2, %s13
      // Predicated region
      $region33: #{tpu_custom_call.1} parent=5 // pred_check
        %p183 = pneg %p182
      $region34: #{tpu_custom_call.1} parent=5 // pred_check_branch
        %185 = sbr.rel (%p183) target = $region36
      $region35: #{tpu_custom_call.1} parent=5 // pred_region
        %s186 = ssub.s32 %s13, 2
        // Predicated region
        $region37: #{tpu_custom_call.1} parent=35 // pred_check
          %p187 = pneg %p68
        $region38: #{tpu_custom_call.1} parent=35 // pred_check_branch
          %189 = sbr.rel (%p187) target = $region40
        $region39: #{tpu_custom_call.1} parent=35 // pred_region
          %s190 = sand.u32 %s53, 1
          %s191 = scalar_lea.sflag [#allocation4], %s190
          %s192 = sand.u32 %s53, 1
          %s193 = smul.addr %s192, 8
          %s194 = scalar_lea.vmem [#allocation5], %s193
          %195 = dma.done %s191, 128
        $region40: #{tpu_custom_call.1} parent=35 // pred_fallthru
          _
      $region36: #{tpu_custom_call.1} parent=5 // pred_fallthru
        _
    $region6: #{tpu_custom_call.1} parent=1 // loop_footer
      %s17 = sadd.s32 1, %s13
    $region7: #{tpu_custom_call.1} parent=1 // loop_footer_branch
      %12 = sbr.rel target = $region3
    $region8: #{tpu_custom_call.1} parent=1 // loop_exit
      _
    %196 = vsyncpa [#allocation3], 1
    %s197 = scalar_lea.sflag [#allocation3], 1
    %198 = vsyncpa %s197, 1
    %199 = vsyncpa [#allocation4], 1
    %s200 = scalar_lea.sflag [#allocation4], 1
    %201 = vsyncpa %s200, 1

</llo_original>
